<compile_context>
chip_gen: v7x
topology: tpu7x:2x2x1
jax: 0.10.0
libtpu: 0.0.40
codegen_flags: <defaults>
</compile_context>

<pallas_src>
import numpy as np
import jax
import jax.numpy as jnp
from jax.experimental import pallas as pl
from jax.experimental.pallas import tpu as pltpu


def _round_up(x, m):
    return (x + m - 1) // m * m


# ----------------------------------------------------------------------------
# Pallas kernel: one (batch, row-tile, L-tile) block.  Rows are already the
# interleaved output rows r = c*heads + h, so everything is dense.
# ----------------------------------------------------------------------------
def _slconv_kernel(cur_ref, halo_ref, k_ref, d_ref, o_ref):
    # cur_ref  : (TR, TL)   current L-tile of the zero-extended, head-expanded signal
    # halo_ref : (TR, H)    next H lanes (H >= K-1, multiple of 128)
    # k_ref    : (TR, K)    tap-REVERSED, normalized effective kernel per output row
    # d_ref    : (TR, 1)    skip weight per output row
    # o_ref    : (TR, TL)   output block (dense, lane- and sublane-dense stores)
    TR, TL = cur_ref.shape
    K = k_ref.shape[-1]
    left = (K - 1) // 2

    SC = min(TL, 512)              # lane sub-chunk: accumulator stays vreg-resident
    RG = TR if TR <= 32 else 32    # row sub-group (multiple of 8 when TR > 32)

    for r0 in range(0, TR, RG):                       # static trace-time loops
        rg = min(RG, TR - r0)
        kblk = k_ref[r0:r0 + rg, :]                   # coefficients loaded once per row group
        dcol = d_ref[r0:r0 + rg, :]
        for b0 in range(0, TL, SC):
            sc = min(SC, TL - b0)
            crosses = b0 + sc + (K - 1) > TL
            if crosses:
                # Window crosses into the halo: build the small tail window once
                # (width sc + K - 1), instead of rolling the full TL+H window per tap.
                need = b0 + sc + (K - 1) - TL
                w = jnp.concatenate(
                    [cur_ref[r0:r0 + rg, b0:TL], halo_ref[r0:r0 + rg, :need]],
                    axis=-1)
            acc = None
            for o in range(K):                        # taps innermost -> vreg accumulation
                coef = kblk[:, o:o + 1]
                if o == left:
                    coef = coef + dcol                # fold skip D*x into tap `left`
                if crosses:
                    xs = w[:, o:o + sc]
                else:
                    xs = cur_ref[r0:r0 + rg, b0 + o:b0 + o + sc]
                term = xs * coef
                acc = term if acc is None else acc + term
            o_ref[r0:r0 + rg, b0:b0 + sc] = acc.astype(o_ref.dtype)


# ----------------------------------------------------------------------------
# Effective-kernel construction (plain JAX glue, mirrors the module)
# ----------------------------------------------------------------------------
def build_effective_kernel(kernel_list, multiplier, num_scales):
    """'nearest' upsample, decay-scale, concat, L2-normalize (first-call norm)."""
    pieces = []
    for i, kern in enumerate(kernel_list):
        s = 2 ** max(0, i - 1)
        k_i = jnp.repeat(kern, s, axis=-1)                    # nearest interpolation
        k_i = k_i * multiplier ** (num_scales - i - 1)
        pieces.append(k_i)
    k = jnp.concatenate(pieces, axis=-1)                      # (heads, C, K)
    return k / jnp.linalg.norm(k, axis=-1, keepdims=True)


def _pick_row_tile(R, TL, H):
    # Keep the double-buffered cur+halo+out working set around <= 24 MiB so the
    # same tiling fits v7x's 64 MiB VMEM as well as v5e/v6e's 128 MiB parts.
    per_row = 4 * 2 * (2 * TL + H)                    # f32, double-buffered cur+out+halo
    budget_rows = max(8, (24 * 1024 * 1024) // per_row)
    if R <= budget_rows:
        return R
    for cand in (512, 256, 128, 64, 32, 16, 8):
        if cand <= budget_rows and R % cand == 0:
            return cand
    return R  # no aligned divisor of R: fall back to full rows (rare)


def slconv_forward(x, kernel_list, D, multiplier, num_scales, *, max_lane_tile=2048):
    """x: (B, C, L) float32 -> y: (B, C*heads, L) float32, output channel = c*heads + h."""
    B, C, L = x.shape
    k = build_effective_kernel(kernel_list, multiplier, num_scales)   # (heads, C, K)
    heads, _, K = k.shape
    R = C * heads
    left = (K - 1) // 2

    # ---- tiling (lane dims multiples of 128; halo H >= K-1) ----
    H = max(128, _round_up(K - 1, 128))
    TL = H * max(1, min(max_lane_tile, _round_up(L, 128)) // H)       # TL % H == 0
    nL = pl.cdiv(L, TL)
    L_pad = nL * TL
    halo_stride = TL // H
    TR = _pick_row_tile(R, TL, H)
    nR = pl.cdiv(R, TR)

    # Head-expanded + zero-extended signal, rows interleaved as r = c*heads + h.
    # Single wrapper copy (repeat + pad fuse); right pad only covers the last tile
    # tail + halo (no extra full-TL zero tile).
    xrep = jnp.repeat(x, heads, axis=1) if heads > 1 else x           # (B, R, L)
    xe = jnp.pad(xrep, ((0, 0), (0, 0), (left, L_pad + H - left - L)))

    # Tap-reversed coefficients / skip weights, pre-interleaved per output row.
    kI = jnp.transpose(k[:, :, ::-1], (1, 0, 2)).reshape(R, K).astype(x.dtype)  # (R, K)
    dI = jnp.transpose(D, (1, 0)).reshape(R, 1).astype(x.dtype)                 # (R, 1)

    blk_bytes = 4 * TR * (2 * TL + H + K + 1)          # one buffer set (cur+out+halo+coefs)
    vmem_limit = int(min(56 * 1024 * 1024, max(32 * 1024 * 1024, 3 * blk_bytes)))

    out = pl.pallas_call(
        _slconv_kernel,
        # Output emitted directly in the final (B, C*heads, L) layout; the last lane
        # block may be partial -- Pallas masks the edge-block writeback.
        out_shape=jax.ShapeDtypeStruct((B, R, L), x.dtype),
        grid=(B, nR, nL),
        in_specs=[
            pl.BlockSpec((None, TR, TL), lambda b, ri, li: (b, ri, li)),
            pl.BlockSpec((None, TR, H),
                         lambda b, ri, li: (b, ri, (li + 1) * halo_stride)),
            pl.BlockSpec((TR, K), lambda b, ri, li: (ri, 0)),
            pl.BlockSpec((TR, 1), lambda b, ri, li: (ri, 0)),
        ],
        out_specs=pl.BlockSpec((None, TR, TL), lambda b, ri, li: (b, ri, li)),
        compiler_params=pltpu.CompilerParams(
            dimension_semantics=("parallel", "parallel", "parallel"),
            vmem_limit_bytes=vmem_limit,
        ),
    )(xe, xe, kI, dI)
    return out


# ----------------------------------------------------------------------------
# Numpy reference (mirrors the PyTorch forward, default path), vectorized over t
# ----------------------------------------------------------------------------
def np_reference(x, kernel_list, D, multiplier, num_scales):
    x64 = np.asarray(x, np.float64)
    D64 = np.asarray(D, np.float64)
    m64 = np.asarray(multiplier, np.float64)
    pieces = []
    for i, kern in enumerate(kernel_list):
        s = 2 ** max(0, i - 1)
        k_i = np.repeat(np.asarray(kern, np.float64), s, axis=-1)
        k_i = k_i * m64 ** (num_scales - i - 1)
        pieces.append(k_i)
    k = np.concatenate(pieces, axis=-1)
    k = k / np.linalg.norm(k, axis=-1, keepdims=True)
    heads, C, K = k.shape
    B, _, L = x64.shape
    left = (K - 1) // 2
    right = (K - 1) - left
    xpad = np.pad(x64, ((0, 0), (0, 0), (left, right)))
    y = np.zeros((B, C * heads, L), np.float64)
    for c in range(C):
        for h in range(heads):
            kr = k[h, c][::-1]                       # kr[j] = k[h, c, K-1-j]
            acc = np.zeros((B, L), np.float64)
            for j in range(K):
                acc += kr[j] * xpad[:, c, j:j + L]
            y[:, c * heads + h, :] = acc + D64[h, c] * x64[:, c, :]
    return y


def _run_case(name, *, B, L, kernel_size, num_channels, num_scales, heads,
              decay_min=1.5, decay_max=2.0, seed=0):
    key = jax.random.PRNGKey(seed)
    k_x, k_d, *k_ks = jax.random.split(key, 2 + num_scales)
    x = jax.random.normal(k_x, (B, num_channels, L), dtype=jnp.float32)
    D = jax.random.normal(k_d, (heads, num_channels), dtype=jnp.float32)
    kernel_list = [
        jax.random.normal(k_ks[i], (heads, num_channels, kernel_size), dtype=jnp.float32)
        for i in range(num_scales)
    ]
    multiplier = jnp.linspace(decay_min, decay_max, num_channels,
                              dtype=jnp.float32).reshape(1, num_channels, 1)

    y = jax.block_until_ready(slconv_forward(x, kernel_list, D, multiplier, num_scales))
    assert y.shape == (B, num_channels * heads, L), (name, y.shape)

    y_ref = np_reference(np.asarray(x), [np.asarray(a) for a in kernel_list],
                         np.asarray(D), np.asarray(multiplier), num_scales)
    np.testing.assert_allclose(np.asarray(y, np.float64), y_ref,
                               rtol=1e-3, atol=1e-4, err_msg=name)


if __name__ == "__main__":
    # Base config consistent with SLConv defaults: K = 4 * 2**(3-1) = 16.
    _run_case("base", B=2, L=16, kernel_size=4, num_channels=4, num_scales=3, heads=2)
    # Multi-L-tile path: halo fetched from the next tile, partial output edge block,
    # K - 1 = 135 > 128 (H = 256), L % TL != 0.
    _run_case("long", B=2, L=300, kernel_size=17, num_channels=3, num_scales=4, heads=2)
    # heads = 1 path (no head expansion).
    _run_case("heads1", B=2, L=16, kernel_size=4, num_channels=4, num_scales=3, heads=1)
    print("KERNEL_OK")
</pallas_src>

<mosaic_0001>
module attributes {stable_mosaic.version = 11 : i64} {
  func.func @_slconv_kernel(%arg0: i32, %arg1: i32, %arg2: i32, %arg3: memref<1x8x128xf32, #tpu.memory_space<vmem>>, %arg4: memref<1x8x128xf32, #tpu.memory_space<vmem>>, %arg5: memref<8x16xf32, #tpu.memory_space<vmem>>, %arg6: memref<8x1xf32, #tpu.memory_space<vmem>>, %arg7: memref<1x8x128xf32, #tpu.memory_space<vmem>>) attributes {dimension_semantics = [#tpu.dimension_semantics<parallel>, #tpu.dimension_semantics<parallel>, #tpu.dimension_semantics<parallel>], iteration_bounds = array<i64: 2, 1, 1>, scalar_prefetch = 0 : i64, scratch_operands = 0 : i64, tpu.core_type = #tpu.core_type<tc>, window_params = [{transform_indices = @transform_0, window_bounds = array<i64: 1, 8, 128>}, {transform_indices = @transform_1, window_bounds = array<i64: 1, 8, 128>}, {transform_indices = @transform_2, window_bounds = array<i64: 8, 16>}, {transform_indices = @transform_3, window_bounds = array<i64: 8, 1>}, {transform_indices = @transform_4, window_bounds = array<i64: 1, 8, 128>}]} {
    %c0 = arith.constant 0 : index
    %c0_0 = arith.constant 0 : index
    %0 = vector.load %arg5[%c0, %c0_0] : memref<8x16xf32, #tpu.memory_space<vmem>>, vector<8x16xf32>
    %c0_1 = arith.constant 0 : index
    %c0_2 = arith.constant 0 : index
    %1 = vector.load %arg6[%c0_1, %c0_2] : memref<8x1xf32, #tpu.memory_space<vmem>>, vector<8x1xf32>
    %c0_3 = arith.constant 0 : index
    %c0_4 = arith.constant 0 : index
    %c0_5 = arith.constant 0 : index
    %2 = vector.load %arg3[%c0_3, %c0_4, %c0_5] : memref<1x8x128xf32, #tpu.memory_space<vmem>>, vector<1x8x128xf32>
    %3 = vector.shape_cast %2 : vector<1x8x128xf32> to vector<8x128xf32>
    %c0_6 = arith.constant 0 : index
    %c0_7 = arith.constant 0 : index
    %c0_8 = arith.constant 0 : index
    %4 = vector.load %arg4[%c0_6, %c0_7, %c0_8] : memref<1x8x128xf32, #tpu.memory_space<vmem>>, vector<1x8x15xf32>
    %5 = vector.shape_cast %4 : vector<1x8x15xf32> to vector<8x15xf32>
    %6 = tpu.concatenate %3, %5 in 1 : vector<8x128xf32>, vector<8x15xf32> -> vector<8x143xf32>
    %7 = vector.extract_strided_slice %0 {offsets = [0, 0], sizes = [8, 1], strides = [1, 1]} : vector<8x16xf32> to vector<8x1xf32>
    %8 = vector.extract_strided_slice %6 {offsets = [0, 0], sizes = [8, 128], strides = [1, 1]} : vector<8x143xf32> to vector<8x128xf32>
    %9 = vector.broadcast %7 : vector<8x1xf32> to vector<8x128xf32>
    %10 = arith.mulf %8, %9 : vector<8x128xf32>
    %11 = vector.extract_strided_slice %0 {offsets = [0, 1], sizes = [8, 1], strides = [1, 1]} : vector<8x16xf32> to vector<8x1xf32>
    %12 = vector.extract_strided_slice %6 {offsets = [0, 1], sizes = [8, 128], strides = [1, 1]} : vector<8x143xf32> to vector<8x128xf32>
    %13 = vector.broadcast %11 : vector<8x1xf32> to vector<8x128xf32>
    %14 = arith.mulf %12, %13 : vector<8x128xf32>
    %15 = arith.addf %10, %14 : vector<8x128xf32>
    %16 = vector.extract_strided_slice %0 {offsets = [0, 2], sizes = [8, 1], strides = [1, 1]} : vector<8x16xf32> to vector<8x1xf32>
    %17 = vector.extract_strided_slice %6 {offsets = [0, 2], sizes = [8, 128], strides = [1, 1]} : vector<8x143xf32> to vector<8x128xf32>
    %18 = vector.broadcast %16 : vector<8x1xf32> to vector<8x128xf32>
    %19 = arith.mulf %17, %18 : vector<8x128xf32>
    %20 = arith.addf %15, %19 : vector<8x128xf32>
    %21 = vector.extract_strided_slice %0 {offsets = [0, 3], sizes = [8, 1], strides = [1, 1]} : vector<8x16xf32> to vector<8x1xf32>
    %22 = vector.extract_strided_slice %6 {offsets = [0, 3], sizes = [8, 128], strides = [1, 1]} : vector<8x143xf32> to vector<8x128xf32>
    %23 = vector.broadcast %21 : vector<8x1xf32> to vector<8x128xf32>
    %24 = arith.mulf %22, %23 : vector<8x128xf32>
    %25 = arith.addf %20, %24 : vector<8x128xf32>
    %26 = vector.extract_strided_slice %0 {offsets = [0, 4], sizes = [8, 1], strides = [1, 1]} : vector<8x16xf32> to vector<8x1xf32>
    %27 = vector.extract_strided_slice %6 {offsets = [0, 4], sizes = [8, 128], strides = [1, 1]} : vector<8x143xf32> to vector<8x128xf32>
    %28 = vector.broadcast %26 : vector<8x1xf32> to vector<8x128xf32>
    %29 = arith.mulf %27, %28 : vector<8x128xf32>
    %30 = arith.addf %25, %29 : vector<8x128xf32>
    %31 = vector.extract_strided_slice %0 {offsets = [0, 5], sizes = [8, 1], strides = [1, 1]} : vector<8x16xf32> to vector<8x1xf32>
    %32 = vector.extract_strided_slice %6 {offsets = [0, 5], sizes = [8, 128], strides = [1, 1]} : vector<8x143xf32> to vector<8x128xf32>
    %33 = vector.broadcast %31 : vector<8x1xf32> to vector<8x128xf32>
    %34 = arith.mulf %32, %33 : vector<8x128xf32>
    %35 = arith.addf %30, %34 : vector<8x128xf32>
    %36 = vector.extract_strided_slice %0 {offsets = [0, 6], sizes = [8, 1], strides = [1, 1]} : vector<8x16xf32> to vector<8x1xf32>
    %37 = vector.extract_strided_slice %6 {offsets = [0, 6], sizes = [8, 128], strides = [1, 1]} : vector<8x143xf32> to vector<8x128xf32>
    %38 = vector.broadcast %36 : vector<8x1xf32> to vector<8x128xf32>
    %39 = arith.mulf %37, %38 : vector<8x128xf32>
    %40 = arith.addf %35, %39 : vector<8x128xf32>
    %41 = vector.extract_strided_slice %0 {offsets = [0, 7], sizes = [8, 1], strides = [1, 1]} : vector<8x16xf32> to vector<8x1xf32>
    %42 = arith.addf %41, %1 : vector<8x1xf32>
    %43 = vector.extract_strided_slice %6 {offsets = [0, 7], sizes = [8, 128], strides = [1, 1]} : vector<8x143xf32> to vector<8x128xf32>
    %44 = vector.broadcast %42 : vector<8x1xf32> to vector<8x128xf32>
    %45 = arith.mulf %43, %44 : vector<8x128xf32>
    %46 = arith.addf %40, %45 : vector<8x128xf32>
    %47 = vector.extract_strided_slice %0 {offsets = [0, 8], sizes = [8, 1], strides = [1, 1]} : vector<8x16xf32> to vector<8x1xf32>
    %48 = vector.extract_strided_slice %6 {offsets = [0, 8], sizes = [8, 128], strides = [1, 1]} : vector<8x143xf32> to vector<8x128xf32>
    %49 = vector.broadcast %47 : vector<8x1xf32> to vector<8x128xf32>
    %50 = arith.mulf %48, %49 : vector<8x128xf32>
    %51 = arith.addf %46, %50 : vector<8x128xf32>
    %52 = vector.extract_strided_slice %0 {offsets = [0, 9], sizes = [8, 1], strides = [1, 1]} : vector<8x16xf32> to vector<8x1xf32>
    %53 = vector.extract_strided_slice %6 {offsets = [0, 9], sizes = [8, 128], strides = [1, 1]} : vector<8x143xf32> to vector<8x128xf32>
    %54 = vector.broadcast %52 : vector<8x1xf32> to vector<8x128xf32>
    %55 = arith.mulf %53, %54 : vector<8x128xf32>
    %56 = arith.addf %51, %55 : vector<8x128xf32>
    %57 = vector.extract_strided_slice %0 {offsets = [0, 10], sizes = [8, 1], strides = [1, 1]} : vector<8x16xf32> to vector<8x1xf32>
    %58 = vector.extract_strided_slice %6 {offsets = [0, 10], sizes = [8, 128], strides = [1, 1]} : vector<8x143xf32> to vector<8x128xf32>
    %59 = vector.broadcast %57 : vector<8x1xf32> to vector<8x128xf32>
    %60 = arith.mulf %58, %59 : vector<8x128xf32>
    %61 = arith.addf %56, %60 : vector<8x128xf32>
    %62 = vector.extract_strided_slice %0 {offsets = [0, 11], sizes = [8, 1], strides = [1, 1]} : vector<8x16xf32> to vector<8x1xf32>
    %63 = vector.extract_strided_slice %6 {offsets = [0, 11], sizes = [8, 128], strides = [1, 1]} : vector<8x143xf32> to vector<8x128xf32>
    %64 = vector.broadcast %62 : vector<8x1xf32> to vector<8x128xf32>
    %65 = arith.mulf %63, %64 : vector<8x128xf32>
    %66 = arith.addf %61, %65 : vector<8x128xf32>
    %67 = vector.extract_strided_slice %0 {offsets = [0, 12], sizes = [8, 1], strides = [1, 1]} : vector<8x16xf32> to vector<8x1xf32>
    %68 = vector.extract_strided_slice %6 {offsets = [0, 12], sizes = [8, 128], strides = [1, 1]} : vector<8x143xf32> to vector<8x128xf32>
    %69 = vector.broadcast %67 : vector<8x1xf32> to vector<8x128xf32>
    %70 = arith.mulf %68, %69 : vector<8x128xf32>
    %71 = arith.addf %66, %70 : vector<8x128xf32>
    %72 = vector.extract_strided_slice %0 {offsets = [0, 13], sizes = [8, 1], strides = [1, 1]} : vector<8x16xf32> to vector<8x1xf32>
    %73 = vector.extract_strided_slice %6 {offsets = [0, 13], sizes = [8, 128], strides = [1, 1]} : vector<8x143xf32> to vector<8x128xf32>
    %74 = vector.broadcast %72 : vector<8x1xf32> to vector<8x128xf32>
    %75 = arith.mulf %73, %74 : vector<8x128xf32>
    %76 = arith.addf %71, %75 : vector<8x128xf32>
    %77 = vector.extract_strided_slice %0 {offsets = [0, 14], sizes = [8, 1], strides = [1, 1]} : vector<8x16xf32> to vector<8x1xf32>
    %78 = vector.extract_strided_slice %6 {offsets = [0, 14], sizes = [8, 128], strides = [1, 1]} : vector<8x143xf32> to vector<8x128xf32>
    %79 = vector.broadcast %77 : vector<8x1xf32> to vector<8x128xf32>
    %80 = arith.mulf %78, %79 : vector<8x128xf32>
    %81 = arith.addf %76, %80 : vector<8x128xf32>
    %82 = vector.extract_strided_slice %0 {offsets = [0, 15], sizes = [8, 1], strides = [1, 1]} : vector<8x16xf32> to vector<8x1xf32>
    %83 = vector.extract_strided_slice %6 {offsets = [0, 15], sizes = [8, 128], strides = [1, 1]} : vector<8x143xf32> to vector<8x128xf32>
    %84 = vector.broadcast %82 : vector<8x1xf32> to vector<8x128xf32>
    %85 = arith.mulf %83, %84 : vector<8x128xf32>
    %86 = arith.addf %81, %85 : vector<8x128xf32>
    %c0_9 = arith.constant 0 : index
    %c0_10 = arith.constant 0 : index
    %c0_11 = arith.constant 0 : index
    %87 = vector.load %arg7[%c0_9, %c0_10, %c0_11] : memref<1x8x128xf32, #tpu.memory_space<vmem>>, vector<1x8x128xf32>
    %88 = vector.shape_cast %87 : vector<1x8x128xf32> to vector<8x128xf32>
    %89 = vector.shape_cast %86 : vector<8x128xf32> to vector<1x8x128xf32>
    tpu.vector_store %arg7[%c0_9, %c0_10, %c0_11], %89 {strides = array<i32>} : memref<1x8x128xf32, #tpu.memory_space<vmem>>, vector<1x8x128xf32>,
    return
  }
  func.func @transform_0(%arg0: i32, %arg1: i32, %arg2: i32) -> (i32, i32, i32) {
    %c0_i32 = arith.constant 0 : i32
    return %arg0, %arg1, %arg2 : i32, i32, i32
  }
  func.func @transform_1(%arg0: i32, %arg1: i32, %arg2: i32) -> (i32, i32, i32) {
    %c1_i32 = arith.constant 1 : i32
    %0 = arith.addi %arg2, %c1_i32 : i32
    %c1_i32_0 = arith.constant 1 : i32
    %1 = arith.muli %0, %c1_i32_0 : i32
    %c0_i32 = arith.constant 0 : i32
    return %arg0, %arg1, %1 : i32, i32, i32
  }
  func.func @transform_2(%arg0: i32, %arg1: i32, %arg2: i32) -> (i32, i32) {
    %c0_i32 = arith.constant 0 : i32
    %c0_i32_0 = arith.constant 0 : i32
    return %arg1, %c0_i32 : i32, i32
  }
  func.func @transform_3(%arg0: i32, %arg1: i32, %arg2: i32) -> (i32, i32) {
    %c0_i32 = arith.constant 0 : i32
    %c0_i32_0 = arith.constant 0 : i32
    return %arg1, %c0_i32 : i32, i32
  }
  func.func @transform_4(%arg0: i32, %arg1: i32, %arg2: i32) -> (i32, i32, i32) {
    %c0_i32 = arith.constant 0 : i32
    return %arg0, %arg1, %arg2 : i32, i32, i32
  }
}

</mosaic_0001>

<llo_original>
// kernel: tpu_custom_call.1
$region0: #{tpu_custom_call.1}
  #allocation0 [shape = 'u32[]', space=smem, size = 0x4, offset = 0x4, fixed_abs, tag = 'smem constant byte address 0x4 - core index']
  #allocation1 [shape = 'u32[144,128]{1,0:T(1,128)}', space=vmem, size = 0x12000, scoped, tag = 'internal scratch']
  %s0 = inlined_call_operand.hbm [shape: f32[2,8,256], index: 0, kind: input, shape index: {}]
  %s1 = inlined_call_operand.hbm [shape: f32[2,8,256], index: 1, kind: input, shape index: {}]
  %s2 = inlined_call_operand.vmem [shape: f32[8,16], index: 2, kind: input, shape index: {}]
  %s3 = inlined_call_operand.vmem [shape: f32[8,1], index: 3, kind: input, shape index: {}]
  %s4 = inlined_call_operand.hbm [shape: f32[2,8,16], index: 4, kind: output, shape index: {}]
  %s5 = sld [smem:[#allocation0]]
  $region57: #{tpu_custom_call.1} parent=0
    _
  %s7 = ssub.s32 1, %s5
  %s8 = scalar_select 0, %s7, %s5
  $region1: #{tpu_custom_call.1} parent=0
    #allocation2 [shape = 'u8[8192]{0}', space=vmem, size = 0x2000, scoped, tag = 'input window, operand 0']
    #allocation3 [shape = 's32[2]{0}', space=sflag, size = 0x8, scoped, tag = 'scoped memory for tpu_custom_call.1']
    #allocation4 [shape = 's32[2]{0}', space=sflag, size = 0x8, scoped, tag = 'scoped memory for tpu_custom_call.1']
    #allocation5 [shape = 'u8[8192]{0}', space=vmem, size = 0x2000, scoped, tag = 'input window, operand 1']
    #allocation6 [shape = 's32[2]{0}', space=sflag, size = 0x8, scoped, tag = 'scoped memory for tpu_custom_call.1']
    #allocation7 [shape = 'u8[8192]{0}', space=vmem, size = 0x2000, scoped, tag = 'output window, operand 0']
    %9 = vsyncpa [#allocation3], 0
    %s10 = scalar_lea.sflag [#allocation3], 1
    %11 = vsyncpa %s10, 0
    %12 = vsyncpa [#allocation6], 0
    %s13 = scalar_lea.sflag [#allocation6], 1
    %14 = vsyncpa %s13, 0
    %15 = vsyncpa [#allocation4], 0
    %s16 = scalar_lea.sflag [#allocation4], 1
    %17 = vsyncpa %s16, 0
    loop: start=0, step=1, limit=4
    $region2: #{tpu_custom_call.1} parent=1 // loop_pre_header
      _
    $region3: #{tpu_custom_call.1} parent=1 // loop_header
      %s19 = sphi 0, %s23
      %p20 = scmp.ge.s32.totalorder %s19, 4
      %s26 = sphi 0, %s45
      %s27 = sphi 0, %s41
      %s28 = sphi 0, %s37
      %s29 = sphi 0, %s26
      %s30 = sphi 0, %s27
      %s31 = sphi 0, %s28
      %s32 = sphi 0, %s29
      %s33 = sphi 0, %s30
      %s34 = sphi 0, %s31
      %s52 = sphi 0, %s54
      %s55 = sphi 0, %s52
      %s56 = sphi 0, %s55
      %s72 = sphi 0, %s56
      %s84 = sphi 0, %s86
      %s87 = sphi 0, %s84
      %s88 = sphi 0, %s87
      %s104 = sphi 0, %s88
      %s110 = sphi 0, %s112
      %s113 = sphi 0, %s110
      %s114 = sphi 0, %s113
      %s130 = sphi 0, %s114
      %s136 = sphi 0, %s138
      %s139 = sphi 0, %s136
      %s140 = sphi 0, %s139
      %s156 = sphi 0, %s140
      %s166 = sphi 0, %s168
      %s169 = sphi 0, %s166
      %s170 = sphi 0, %s169
      %s186 = sphi 0, %s170
    $region4: #{tpu_custom_call.1} parent=1 // loop_header_branch
      %22 = sbr.rel (%p20) target = $region8
    $region5: #{tpu_custom_call.1} parent=1 // loop_body
      %s24 = ssub.s32 %s19, 1
      %s25 = ssub.s32 %s19, 2
      %s35 = sadd.s32 1, %s28
      %p36 = scmp.ge.s32.totalorder %s35, 1
      %s37 = scalar_select %p36, 0, %s35
      %s38 = sadd.s32 1, %s27
      %s39 = scalar_select %p36, %s38, %s27
      %p40 = scmp.ge.s32.totalorder %s39, 1
      %s41 = scalar_select %p40, 0, %s39
      %s42 = sadd.s32 1, %s26
      %s43 = scalar_select %p40, %s42, %s26
      %p44 = scmp.ge.s32.totalorder %s43, 2
      %s45 = scalar_select %p44, 0, %s43
      %s46 = ssub.s32 %s26, %s45
      %s47 = ssub.s32 %s27, %s41
      %s48 = sor.u32 %s46, %s47
      %s49 = ssub.s32 %s28, %s37
      %s50 = sor.u32 %s48, %s49
      %p51 = scmp.eq.s32.totalorder %s50, 0
      %s53 = sadd.s32 %s52, 1
      %s54 = scalar_select %p51, %s52, %s53
      %p57 = pneg %p51
      %p58 = scmp.eq.s32.totalorder %s19, 1
      %p59 = por %p57, %p58
      %p60 = scmp.ne.s32.totalorder %s52, %s55
      %p61 = scmp.eq.s32.totalorder %s19, 0
      %p62 = por %p60, %p61
      %p63 = scmp.ne.s32.totalorder %s52, %s55
      %p64 = scmp.eq.s32.totalorder %s24, 1
      %p65 = por %p63, %p64
      %p66 = scmp.ne.s32.totalorder %s55, %s56
      %p67 = scmp.eq.s32.totalorder %s24, 0
      %p68 = por %p66, %p67
      %p69 = scmp.ne.s32.totalorder %s55, %s56
      %p70 = scmp.eq.s32.totalorder %s25, 1
      %p71 = por %p69, %p70
      %p73 = scmp.ne.s32.totalorder %s56, %s72
      %p74 = scmp.eq.s32.totalorder %s25, 0
      %p75 = por %p73, %p74
      %s76 = sadd.s32 %s28, 1
      %s77 = sadd.s32 %s37, 1
      %s78 = ssub.s32 %s26, %s45
      %s79 = ssub.s32 %s27, %s41
      %s80 = sor.u32 %s78, %s79
      %s81 = ssub.s32 %s76, %s77
      %s82 = sor.u32 %s80, %s81
      %p83 = scmp.eq.s32.totalorder %s82, 0
      %s85 = sadd.s32 %s84, 1
      %s86 = scalar_select %p83, %s84, %s85
      %p89 = pneg %p83
      %p90 = scmp.eq.s32.totalorder %s19, 1
      %p91 = por %p89, %p90
      %p92 = scmp.ne.s32.totalorder %s84, %s87
      %p93 = scmp.eq.s32.totalorder %s19, 0
      %p94 = por %p92, %p93
      %p95 = scmp.ne.s32.totalorder %s84, %s87
      %p96 = scmp.eq.s32.totalorder %s24, 1
      %p97 = por %p95, %p96
      %p98 = scmp.ne.s32.totalorder %s87, %s88
      %p99 = scmp.eq.s32.totalorder %s24, 0
      %p100 = por %p98, %p99
      %p101 = scmp.ne.s32.totalorder %s87, %s88
      %p102 = scmp.eq.s32.totalorder %s25, 1
      %p103 = por %p101, %p102
      %p105 = scmp.ne.s32.totalorder %s88, %s104
      %p106 = scmp.eq.s32.totalorder %s25, 0
      %p107 = por %p105, %p106
      %s108 = ssub.s32 %s27, %s41
      %p109 = scmp.eq.s32.totalorder %s108, 0
      %s111 = sadd.s32 %s110, 1
      %s112 = scalar_select %p109, %s110, %s111
      %p115 = pneg %p109
      %p116 = scmp.eq.s32.totalorder %s19, 1
      %p117 = por %p115, %p116
      %p118 = scmp.ne.s32.totalorder %s110, %s113
      %p119 = scmp.eq.s32.totalorder %s19, 0
      %p120 = por %p118, %p119
      %p121 = scmp.ne.s32.totalorder %s110, %s113
      %p122 = scmp.eq.s32.totalorder %s24, 1
      %p123 = por %p121, %p122
      %p124 = scmp.ne.s32.totalorder %s113, %s114
      %p125 = scmp.eq.s32.totalorder %s24, 0
      %p126 = por %p124, %p125
      %p127 = scmp.ne.s32.totalorder %s113, %s114
      %p128 = scmp.eq.s32.totalorder %s25, 1
      %p129 = por %p127, %p128
      %p131 = scmp.ne.s32.totalorder %s114, %s130
      %p132 = scmp.eq.s32.totalorder %s25, 0
      %p133 = por %p131, %p132
      %s134 = ssub.s32 %s27, %s41
      %p135 = scmp.eq.s32.totalorder %s134, 0
      %s137 = sadd.s32 %s136, 1
      %s138 = scalar_select %p135, %s136, %s137
      %p141 = pneg %p135
      %p142 = scmp.eq.s32.totalorder %s19, 1
      %p143 = por %p141, %p142
      %p144 = scmp.ne.s32.totalorder %s136, %s139
      %p145 = scmp.eq.s32.totalorder %s19, 0
      %p146 = por %p144, %p145
      %p147 = scmp.ne.s32.totalorder %s136, %s139
      %p148 = scmp.eq.s32.totalorder %s24, 1
      %p149 = por %p147, %p148
      %p150 = scmp.ne.s32.totalorder %s139, %s140
      %p151 = scmp.eq.s32.totalorder %s24, 0
      %p152 = por %p150, %p151
      %p153 = scmp.ne.s32.totalorder %s139, %s140
      %p154 = scmp.eq.s32.totalorder %s25, 1
      %p155 = por %p153, %p154
      %p157 = scmp.ne.s32.totalorder %s140, %s156
      %p158 = scmp.eq.s32.totalorder %s25, 0
      %p159 = por %p157, %p158
      %s160 = ssub.s32 %s26, %s45
      %s161 = ssub.s32 %s27, %s41
      %s162 = sor.u32 %s160, %s161
      %s163 = ssub.s32 %s28, %s37
      %s164 = sor.u32 %s162, %s163
      %p165 = scmp.eq.s32.totalorder %s164, 0
      %s167 = sadd.s32 %s166, 1
      %s168 = scalar_select %p165, %s166, %s167
      %p171 = pneg %p165
      %p172 = scmp.eq.s32.totalorder %s19, 1
      %p173 = por %p171, %p172
      %p174 = scmp.ne.s32.totalorder %s166, %s169
      %p175 = scmp.eq.s32.totalorder %s19, 0
      %p176 = por %p174, %p175
      %p177 = scmp.ne.s32.totalorder %s166, %s169
      %p178 = scmp.eq.s32.totalorder %s24, 1
      %p179 = por %p177, %p178
      %p180 = scmp.ne.s32.totalorder %s169, %s170
      %p181 = scmp.eq.s32.totalorder %s24, 0
      %p182 = por %p180, %p181
      %p183 = scmp.ne.s32.totalorder %s169, %s170
      %p184 = scmp.eq.s32.totalorder %s25, 1
      %p185 = por %p183, %p184
      %p187 = scmp.ne.s32.totalorder %s170, %s186
      %p188 = scmp.eq.s32.totalorder %s25, 0
      %p189 = por %p187, %p188
      %p190 = scmp.le.s32.totalorder 1, %s19
      %p191 = scmp.lt.s32.totalorder %s19, 3
      %p192 = pnand %p190, %p191
      %p193 = pneg %p192
      // Predicated region
      $region9: #{tpu_custom_call.1} parent=5 // pred_check
        _
      $region10: #{tpu_custom_call.1} parent=5 // pred_check_branch
        %195 = sbr.rel (%p192) target = $region12
      $region11: #{tpu_custom_call.1} parent=5 // pred_region
        %s196 = ssub.s32 %s19, 1
        // Predicated region
        $region13: #{tpu_custom_call.1} parent=11 // pred_check
          %p197 = pneg %p126
        $region14: #{tpu_custom_call.1} parent=11 // pred_check_branch
          %199 = sbr.rel (%p197) target = $region16
        $region15: #{tpu_custom_call.1} parent=11 // pred_region
          %p200 = scmp.lt.s32.totalorder %s30, 0
          %s201 = scalar_select %p200, %s30, 0
          %s202 = smul.addr %s201, 8
          %s203 = scalar_lea.vmem %s2, %s202
        $region16: #{tpu_custom_call.1} parent=11 // pred_fallthru
          _
        // Predicated region
        $region17: #{tpu_custom_call.1} parent=11 // pred_check
          %p204 = pneg %p152
        $region18: #{tpu_custom_call.1} parent=11 // pred_check_branch
          %206 = sbr.rel (%p204) target = $region20
        $region19: #{tpu_custom_call.1} parent=11 // pred_region
          %p207 = scmp.lt.s32.totalorder %s30, 0
          %s208 = scalar_select %p207, %s30, 0
          %s209 = smul.addr %s208, 8
          %s210 = scalar_lea.vmem %s3, %s209
        $region20: #{tpu_custom_call.1} parent=11 // pred_fallthru
          _
      $region12: #{tpu_custom_call.1} parent=5 // pred_fallthru
        _
      %p211 = scmp.lt.s32.totalorder %s19, 2
      // Predicated region
      $region21: #{tpu_custom_call.1} parent=5 // pred_check
        %p212 = pneg %p211
      $region22: #{tpu_custom_call.1} parent=5 // pred_check_branch
        %214 = sbr.rel (%p212) target = $region24
      $region23: #{tpu_custom_call.1} parent=5 // pred_region
        // Predicated region
        $region25: #{tpu_custom_call.1} parent=23 // pred_check
          %p215 = pneg %p62
        $region26: #{tpu_custom_call.1} parent=23 // pred_check_branch
          %217 = sbr.rel (%p215) target = $region28
        $region27: #{tpu_custom_call.1} parent=23 // pred_region
          %s218 = sand.u32 %s52, 1
          %s219 = scalar_lea.sflag [#allocation3], %s218
          %s220 = sand.u32 %s52, 1
          %s221 = smul.addr %s220, 8
          %s222 = scalar_lea.vmem [#allocation2], %s221
          %s224 = ssub.s32 128, 128
          %225 = vsyncadd %s219, %s224
          %s226 = smul.addr %s27, 2
          %s227 = sadd.s32 %s28, %s226
          %s228 = smul.addr %s26, 2
          %s229 = sadd.s32 %s227, %s228
          %s230 = smul.addr %s229, 128
          %s231 = scalar_lea.hbm %s0, %s230
          %s233 = sshll.u32 %s222, 4
          %s234 = int_to_ptr.vmem [resolvable:$true] %s233
          %236 = dma.hbm_to_vmem [thread:$0]  %s231, 128, %s234, %s219
        $region28: #{tpu_custom_call.1} parent=23 // pred_fallthru
          _
        // Predicated region
        $region29: #{tpu_custom_call.1} parent=23 // pred_check
          %p237 = pneg %p94
        $region30: #{tpu_custom_call.1} parent=23 // pred_check_branch
          %239 = sbr.rel (%p237) target = $region32
        $region31: #{tpu_custom_call.1} parent=23 // pred_region
          %s240 = sand.u32 %s84, 1
          %s241 = scalar_lea.sflag [#allocation6], %s240
          %s242 = sand.u32 %s84, 1
          %s243 = smul.addr %s242, 8
          %s244 = scalar_lea.vmem [#allocation5], %s243
          %s245 = sadd.s32 %s28, 1
          %s247 = ssub.s32 128, 128
          %248 = vsyncadd %s241, %s247
          %s249 = smul.addr %s27, 2
          %s250 = sadd.s32 %s245, %s249
          %s251 = smul.addr %s26, 2
          %s252 = sadd.s32 %s250, %s251
          %s253 = smul.addr %s252, 128
          %s254 = scalar_lea.hbm %s1, %s253
          %s256 = sshll.u32 %s244, 4
          %s257 = int_to_ptr.vmem [resolvable:$true] %s256
          %259 = dma.hbm_to_vmem [thread:$0]  %s254, 128, %s257, %s241
        $region32: #{tpu_custom_call.1} parent=23 // pred_fallthru
          _
      $region24: #{tpu_custom_call.1} parent=5 // pred_fallthru
        _
      %p260 = scmp.le.s32.totalorder 1, %s19
      %p261 = scmp.lt.s32.totalorder %s19, 3
      %p262 = pnand %p260, %p261
      %p263 = pneg %p262
      // Predicated region
      $region33: #{tpu_custom_call.1} parent=5 // pred_check
        _
      $region34: #{tpu_custom_call.1} parent=5 // pred_check_branch
        %265 = sbr.rel (%p262) target = $region36
      $region35: #{tpu_custom_call.1} parent=5 // pred_region
        %s266 = ssub.s32 %s19, 1
        %s267 = sand.u32 %s55, 1
        %s268 = scalar_lea.sflag [#allocation3], %s267
        %s269 = sand.u32 %s55, 1
        %s270 = smul.addr %s269, 8
        %s271 = scalar_lea.vmem [#allocation2], %s270
        // Predicated region
        $region37: #{tpu_custom_call.1} parent=35 // pred_check
          %p272 = pneg %p68
        $region38: #{tpu_custom_call.1} parent=35 // pred_check_branch
          %274 = sbr.rel (%p272) target = $region40
        $region39: #{tpu_custom_call.1} parent=35 // pred_region
          %275 = dma.done %s268, 128
        $region40: #{tpu_custom_call.1} parent=35 // pred_fallthru
          _
        %s276 = sand.u32 %s87, 1
        %s277 = scalar_lea.sflag [#allocation6], %s276
        %s278 = sand.u32 %s87, 1
        %s279 = smul.addr %s278, 8
        %s280 = scalar_lea.vmem [#allocation5], %s279
        // Predicated region
        $region41: #{tpu_custom_call.1} parent=35 // pred_check
          %p281 = pneg %p100
        $region42: #{tpu_custom_call.1} parent=35 // pred_check_branch
          %283 = sbr.rel (%p281) target = $region44
        $region43: #{tpu_custom_call.1} parent=35 // pred_region
          %284 = dma.done %s277, 128
        $region44: #{tpu_custom_call.1} parent=35 // pred_fallthru
          _
        %s285 = sand.u32 %s55, 1
        %s286 = scalar_lea.sflag [#allocation3], %s285
        %s287 = sand.u32 %s55, 1
        %s288 = smul.addr %s287, 8
        %s289 = scalar_lea.vmem [#allocation2], %s288
        %p290 = pneg %p68
        %p291 = pneg %p65
        %s292 = sand.u32 %s87, 1
        %s293 = scalar_lea.sflag [#allocation6], %s292
        %s294 = sand.u32 %s87, 1
        %s295 = smul.addr %s294, 8
        %s296 = scalar_lea.vmem [#allocation5], %s295
        %p297 = pneg %p100
        %p298 = pneg %p97
        %p299 = scmp.lt.s32.totalorder %s30, 0
        %s300 = scalar_select %p299, %s30, 0
        %s301 = smul.addr %s300, 8
        %s302 = scalar_lea.vmem %s2, %s301
        %p303 = pneg %p126
        %p304 = pneg %p123
        %p305 = scmp.lt.s32.totalorder %s30, 0
        %s306 = scalar_select %p305, %s30, 0
        %s307 = smul.addr %s306, 8
        %s308 = scalar_lea.vmem %s3, %s307
        %p309 = pneg %p152
        %p310 = pneg %p149
        %p311 = pneg %p182
        %p312 = pneg %p179
        %s313 = sand.u32 %s169, 1
        %s314 = scalar_lea.sflag [#allocation4], %s313
        %s315 = sand.u32 %s169, 1
        %s316 = smul.addr %s315, 8
        %s317 = scalar_lea.vmem [#allocation7], %s316
        %s318 = sadd.s32 %s31, 1
        %p319 = scmp.lt.s32.totalorder %s30, 0
        %s320 = scalar_select %p319, %s30, 0
        %s321 = smul.addr %s320, 8
        %s322 = scalar_lea.vmem %s2, %s321
        %p323 = scmp.lt.s32.totalorder %s30, 0
        %s324 = scalar_select %p323, %s30, 0
        %s325 = smul.addr %s324, 8
        %s326 = scalar_lea.vmem %s3, %s325
        %v327 = vld [vmem:[%s322] sm:$0xff]
        %v328 = vld [vmem:[%s326] sm:$0xff]
        %v329 = vld [vmem:[%s271] sm:$0xff]
        %v330 = vld [vmem:[%s280] sm:$0xff]
        %332 = vset.pattern.permute.xlu0 0
        %333 = vperm.xlu0 %332, %v327
        %v334 = vpop.permute.xlu0 %333
        %v336 = vmul.f32 %v329, %v334
        %337 = vset.pattern.permute.xlu0 1
        %338 = vperm.xlu0 %337, %v327
        %v339 = vpop.permute.xlu0 %338
        %v341 = vmul.f32 %v329, %v339
        %v342 = vmul.f32 %v330, %v339
        %345 = vrot.lane.b32.xlu0 %v341, 127
        %v346 = vpop.permute.xlu0 %345
        %347 = vrot.lane.b32.xlu0 %v342, 127
        %v348 = vpop.permute.xlu0 %347
        %vm349 = vcmask 1039360
        %v350 = vsel %vm349, %v346, %v348
        %v352 = vadd.f32 %v336, %v350
        %353 = vset.pattern.permute.xlu0 2
        %354 = vperm.xlu0 %353, %v327
        %v355 = vpop.permute.xlu0 %354
        %v357 = vmul.f32 %v329, %v355
        %v358 = vmul.f32 %v330, %v355
        %361 = vrot.lane.b32.xlu0 %v357, 126
        %v362 = vpop.permute.xlu0 %361
        %363 = vrot.lane.b32.xlu0 %v358, 126
        %v364 = vpop.permute.xlu0 %363
        %vm365 = vcmask 1031168
        %v366 = vsel %vm365, %v362, %v364
        %v368 = vadd.f32 %v352, %v366
        %369 = vset.pattern.permute.xlu0 3
        %370 = vperm.xlu0 %369, %v327
        %v371 = vpop.permute.xlu0 %370
        %v373 = vmul.f32 %v329, %v371
        %v374 = vmul.f32 %v330, %v371
        %377 = vrot.lane.b32.xlu0 %v373, 125
        %v378 = vpop.permute.xlu0 %377
        %379 = vrot.lane.b32.xlu0 %v374, 125
        %v380 = vpop.permute.xlu0 %379
        %vm381 = vcmask 1022976
        %v382 = vsel %vm381, %v378, %v380
        %v384 = vadd.f32 %v368, %v382
        %385 = vset.pattern.permute.xlu0 4
        %386 = vperm.xlu0 %385, %v327
        %v387 = vpop.permute.xlu0 %386
        %v389 = vmul.f32 %v329, %v387
        %v390 = vmul.f32 %v330, %v387
        %393 = vrot.lane.b32.xlu0 %v389, 124
        %v394 = vpop.permute.xlu0 %393
        %395 = vrot.lane.b32.xlu0 %v390, 124
        %v396 = vpop.permute.xlu0 %395
        %vm397 = vcmask 1014784
        %v398 = vsel %vm397, %v394, %v396
        %v400 = vadd.f32 %v384, %v398
        %401 = vset.pattern.permute.xlu0 5
        %402 = vperm.xlu0 %401, %v327
        %v403 = vpop.permute.xlu0 %402
        %v405 = vmul.f32 %v329, %v403
        %v406 = vmul.f32 %v330, %v403
        %409 = vrot.lane.b32.xlu0 %v405, 123
        %v410 = vpop.permute.xlu0 %409
        %411 = vrot.lane.b32.xlu0 %v406, 123
        %v412 = vpop.permute.xlu0 %411
        %vm413 = vcmask 1006592
        %v414 = vsel %vm413, %v410, %v412
        %v416 = vadd.f32 %v400, %v414
        %417 = vset.pattern.permute.xlu0 6
        %418 = vperm.xlu0 %417, %v327
        %v419 = vpop.permute.xlu0 %418
        %v421 = vmul.f32 %v329, %v419
        %v422 = vmul.f32 %v330, %v419
        %425 = vrot.lane.b32.xlu0 %v421, 122
        %v426 = vpop.permute.xlu0 %425
        %427 = vrot.lane.b32.xlu0 %v422, 122
        %v428 = vpop.permute.xlu0 %427
        %vm429 = vcmask 998400
        %v430 = vsel %vm429, %v426, %v428
        %v432 = vadd.f32 %v416, %v430
        %434 = vrot.lane.b32.xlu0 %v328, 7
        %v435 = vpop.permute.xlu0 %434
        %v437 = vadd.f32 %v327, %v435
        %439 = vset.pattern.permute.xlu0 7
        %440 = vperm.xlu0 %439, %v437
        %v441 = vpop.permute.xlu0 %440
        %v443 = vmul.f32 %v329, %v441
        %v444 = vmul.f32 %v330, %v441
        %447 = vrot.lane.b32.xlu0 %v443, 121
        %v448 = vpop.permute.xlu0 %447
        %449 = vrot.lane.b32.xlu0 %v444, 121
        %v450 = vpop.permute.xlu0 %449
        %vm451 = vcmask 990208
        %v452 = vsel %vm451, %v448, %v450
        %v454 = vadd.f32 %v432, %v452
        %455 = vset.pattern.permute.xlu0 8
        %456 = vperm.xlu0 %455, %v327
        %v457 = vpop.permute.xlu0 %456
        %v459 = vmul.f32 %v329, %v457
        %v460 = vmul.f32 %v330, %v457
        %463 = vrot.lane.b32.xlu0 %v459, 120
        %v464 = vpop.permute.xlu0 %463
        %465 = vrot.lane.b32.xlu0 %v460, 120
        %v466 = vpop.permute.xlu0 %465
        %vm467 = vcmask 982016
        %v468 = vsel %vm467, %v464, %v466
        %v470 = vadd.f32 %v454, %v468
        %471 = vset.pattern.permute.xlu0 9
        %472 = vperm.xlu0 %471, %v327
        %v473 = vpop.permute.xlu0 %472
        %v475 = vmul.f32 %v329, %v473
        %v476 = vmul.f32 %v330, %v473
        %479 = vrot.lane.b32.xlu0 %v475, 119
        %v480 = vpop.permute.xlu0 %479
        %481 = vrot.lane.b32.xlu0 %v476, 119
        %v482 = vpop.permute.xlu0 %481
        %vm483 = vcmask 973824
        %v484 = vsel %vm483, %v480, %v482
        %v486 = vadd.f32 %v470, %v484
        %487 = vset.pattern.permute.xlu0 10
        %488 = vperm.xlu0 %487, %v327
        %v489 = vpop.permute.xlu0 %488
        %v491 = vmul.f32 %v329, %v489
        %v492 = vmul.f32 %v330, %v489
        %495 = vrot.lane.b32.xlu0 %v491, 118
        %v496 = vpop.permute.xlu0 %495
        %497 = vrot.lane.b32.xlu0 %v492, 118
        %v498 = vpop.permute.xlu0 %497
        %vm499 = vcmask 965632
        %v500 = vsel %vm499, %v496, %v498
        %v502 = vadd.f32 %v486, %v500
        %503 = vset.pattern.permute.xlu0 11
        %504 = vperm.xlu0 %503, %v327
        %v505 = vpop.permute.xlu0 %504
        %v507 = vmul.f32 %v329, %v505
        %v508 = vmul.f32 %v330, %v505
        %511 = vrot.lane.b32.xlu0 %v507, 117
        %v512 = vpop.permute.xlu0 %511
        %513 = vrot.lane.b32.xlu0 %v508, 117
        %v514 = vpop.permute.xlu0 %513
        %vm515 = vcmask 957440
        %v516 = vsel %vm515, %v512, %v514
        %v518 = vadd.f32 %v502, %v516
        %519 = vset.pattern.permute.xlu0 12
        %520 = vperm.xlu0 %519, %v327
        %v521 = vpop.permute.xlu0 %520
        %v523 = vmul.f32 %v329, %v521
        %v524 = vmul.f32 %v330, %v521
        %527 = vrot.lane.b32.xlu0 %v523, 116
        %v528 = vpop.permute.xlu0 %527
        %529 = vrot.lane.b32.xlu0 %v524, 116
        %v530 = vpop.permute.xlu0 %529
        %vm531 = vcmask 949248
        %v532 = vsel %vm531, %v528, %v530
        %v534 = vadd.f32 %v518, %v532
        %535 = vset.pattern.permute.xlu0 13
        %536 = vperm.xlu0 %535, %v327
        %v537 = vpop.permute.xlu0 %536
        %v539 = vmul.f32 %v329, %v537
        %v540 = vmul.f32 %v330, %v537
        %543 = vrot.lane.b32.xlu0 %v539, 115
        %v544 = vpop.permute.xlu0 %543
        %545 = vrot.lane.b32.xlu0 %v540, 115
        %v546 = vpop.permute.xlu0 %545
        %vm547 = vcmask 941056
        %v548 = vsel %vm547, %v544, %v546
        %v550 = vadd.f32 %v534, %v548
        %551 = vset.pattern.permute.xlu0 14
        %552 = vperm.xlu0 %551, %v327
        %v553 = vpop.permute.xlu0 %552
        %v555 = vmul.f32 %v329, %v553
        %v556 = vmul.f32 %v330, %v553
        %559 = vrot.lane.b32.xlu0 %v555, 114
        %v560 = vpop.permute.xlu0 %559
        %561 = vrot.lane.b32.xlu0 %v556, 114
        %v562 = vpop.permute.xlu0 %561
        %vm563 = vcmask 932864
        %v564 = vsel %vm563, %v560, %v562
        %v566 = vadd.f32 %v550, %v564
        %567 = vset.pattern.permute.xlu0 15
        %568 = vperm.xlu0 %567, %v327
        %v569 = vpop.permute.xlu0 %568
        %v571 = vmul.f32 %v329, %v569
        %v572 = vmul.f32 %v330, %v569
        %575 = vrot.lane.b32.xlu0 %v571, 113
        %v576 = vpop.permute.xlu0 %575
        %577 = vrot.lane.b32.xlu0 %v572, 113
        %v578 = vpop.permute.xlu0 %577
        %vm579 = vcmask 924672
        %v580 = vsel %vm579, %v576, %v578
        %v582 = vadd.f32 %v566, %v580
        %583 = vst [vmem:[%s317] sm:$0xff] %v582
        %s584 = sand.u32 %s169, 1
        %s585 = scalar_lea.sflag [#allocation4], %s584
        %s586 = sand.u32 %s169, 1
        %s587 = smul.addr %s586, 8
        %s588 = scalar_lea.vmem [#allocation7], %s587
        // Predicated region
        $region45: #{tpu_custom_call.1} parent=35 // pred_check
          %p589 = pneg %p179
        $region46: #{tpu_custom_call.1} parent=35 // pred_check_branch
          %591 = sbr.rel (%p589) target = $region48
        $region47: #{tpu_custom_call.1} parent=35 // pred_region
          %s593 = ssub.s32 128, 128
          %594 = vsyncadd %s585, %s593
          %s595 = sadd.s32 %s31, %s30
          %s596 = sadd.s32 %s595, %s29
          %s597 = smul.addr %s596, 128
          %s598 = scalar_lea.hbm %s4, %s597
          %s600 = sshll.u32 %s588, 4
          %s601 = int_to_ptr.vmem [resolvable:$true] %s600
          %603 = dma.vmem_to_hbm [thread:$0]  %s601, 128, %s598, %s585
        $region48: #{tpu_custom_call.1} parent=35 // pred_fallthru
          _
      $region36: #{tpu_custom_call.1} parent=5 // pred_fallthru
        _
      %p604 = scmp.le.s32.totalorder 2, %s19
      // Predicated region
      $region49: #{tpu_custom_call.1} parent=5 // pred_check
        %p605 = pneg %p604
      $region50: #{tpu_custom_call.1} parent=5 // pred_check_branch
        %607 = sbr.rel (%p605) target = $region52
      $region51: #{tpu_custom_call.1} parent=5 // pred_region
        %s608 = ssub.s32 %s19, 2
        // Predicated region
        $region53: #{tpu_custom_call.1} parent=51 // pred_check
          %p609 = pneg %p185
        $region54: #{tpu_custom_call.1} parent=51 // pred_check_branch
          %611 = sbr.rel (%p609) target = $region56
        $region55: #{tpu_custom_call.1} parent=51 // pred_region
          %s612 = sand.u32 %s170, 1
          %s613 = scalar_lea.sflag [#allocation4], %s612
          %s614 = sand.u32 %s170, 1
          %s615 = smul.addr %s614, 8
          %s616 = scalar_lea.vmem [#allocation7], %s615
          %617 = dma.done %s613, 128
        $region56: #{tpu_custom_call.1} parent=51 // pred_fallthru
          _
      $region52: #{tpu_custom_call.1} parent=5 // pred_fallthru
        _
    $region6: #{tpu_custom_call.1} parent=1 // loop_footer
      %s23 = sadd.s32 1, %s19
    $region7: #{tpu_custom_call.1} parent=1 // loop_footer_branch
      %18 = sbr.rel target = $region3
    $region8: #{tpu_custom_call.1} parent=1 // loop_exit
      _
    %618 = vsyncpa [#allocation3], 1
    %s619 = scalar_lea.sflag [#allocation3], 1
    %620 = vsyncpa %s619, 1
    %621 = vsyncpa [#allocation6], 1
    %s622 = scalar_lea.sflag [#allocation6], 1
    %623 = vsyncpa %s622, 1
    %624 = vsyncpa [#allocation4], 1
    %s625 = scalar_lea.sflag [#allocation4], 1
    %626 = vsyncpa %s625, 1

</llo_original>
